<compile_context>
chip_gen: v7x
topology: tpu7x:2x2x1
jax: 0.10.0
libtpu: 0.0.40
codegen_flags: <defaults>
</compile_context>

<pallas_src>
import jax
import jax.numpy as jnp
from jax.experimental import pallas as pl
from jax.experimental.pallas import tpu as pltpu  # noqa: F401

LN_EPS = 1e-5  # torch.nn.LayerNorm default


def _gate_kernel(x1_ref, x2_ref,
                 w1a_ref, w1b_ref, b1_ref,
                 w2f_ref, b2_ref,
                 beta_ref, gamma_ref, lnb_ref,
                 out_ref):
    D1 = out_ref.shape[-1]

    # Native-dtype operands for the MXU; f32 copies for VPU / norm math.
    x1 = x1_ref[...]                                  # (B, D1)
    x2 = x2_ref[...]                                  # (B, D2)
    x1f = x1.astype(jnp.float32)
    x2f = x2.astype(jnp.float32)

    # --- fc2, both halves in ONE MXU push on the block-diagonal fused weight.
    #     t[:, :D1] = x1 @ W2a ,  t[:, D1:] = x2 @ W2b
    xc = jnp.concatenate([x1, x2], axis=-1)           # (B, D1+D2) lane concat
    t = jnp.dot(xc, w2f_ref[...],
                preferred_element_type=jnp.float32)   # (B, 2*D1), f32 accum

    # --- fc1 on the VPU (mul) + lane reduce; sigmoid on the EUP.
    #     Runs concurrently with the MXU matmul above (no data dependency).
    logits = (jnp.sum(x1f * w1a_ref[...], axis=-1, keepdims=True)
              + jnp.sum(x2f * w1b_ref[...], axis=-1, keepdims=True)
              + b1_ref[...])                          # (B, 1)
    gate = jax.nn.sigmoid(logits)                     # (B, 1)

    # gate factored out of the matmul: (g*x2)@W2b == g*(x2@W2b)
    adjust = t[:, :D1] + gate * t[:, D1:] + b2_ref[...]   # (B, D1)

    # alpha = min(||x1||_F / ||adjust||_F * beta, 1.0)  -- sqrt * rsqrt, no divide.
    n1_sq = jnp.sum(x1f * x1f)
    na_sq = jnp.sum(adjust * adjust)
    alpha = jnp.minimum(jnp.sqrt(n1_sq) * jax.lax.rsqrt(na_sq) * beta_ref[...],
                        jnp.float32(1.0))             # (1, 1)

    out = x1f + alpha * adjust                        # (B, D1)

    # LayerNorm over the feature (lane) axis, f32 math.
    mean = jnp.mean(out, axis=-1, keepdims=True)
    var = jnp.mean((out - mean) ** 2, axis=-1, keepdims=True)
    normed = (out - mean) * jax.lax.rsqrt(var + LN_EPS)
    out_ref[...] = (normed * gamma_ref[...] + lnb_ref[...]).astype(out_ref.dtype)


def _full_spec(x):
    # Whole-array block, single (empty) grid point.
    return pl.BlockSpec(x.shape, lambda *_: (0,) * x.ndim)


def gate_forward(inp1, inp2, params):
    """params: fc1_w (D1+D2,1), fc1_b (1,), fc2_w (D1+D2,D1), fc2_b (D1,),
    beta (1,), ln_gamma (D1,), ln_beta (D1,).  Linear weights are stored
    pre-transposed as (in_features, out_features)."""
    B, D1 = inp1.shape
    _, D2 = inp2.shape
    dt = inp1.dtype

    # fc1 weights as broadcastable f32 rows (VPU path).
    w1a = params["fc1_w"][:D1, 0].reshape(1, D1).astype(jnp.float32)
    w1b = params["fc1_w"][D1:, 0].reshape(1, D2).astype(jnp.float32)
    b1 = params["fc1_b"].reshape(1, 1).astype(jnp.float32)

    # fc2 block-diagonal fused weight (D1+D2, 2*D1), in the MXU operand dtype.
    w2f = jnp.zeros((D1 + D2, 2 * D1), params["fc2_w"].dtype)
    w2f = w2f.at[:D1, :D1].set(params["fc2_w"][:D1, :])
    w2f = w2f.at[D1:, D1:].set(params["fc2_w"][D1:, :])
    w2f = w2f.astype(dt)

    b2 = params["fc2_b"].reshape(1, D1).astype(jnp.float32)
    beta = params["beta"].reshape(1, 1).astype(jnp.float32)
    gamma = params["ln_gamma"].reshape(1, D1).astype(jnp.float32)
    lnb = params["ln_beta"].reshape(1, D1).astype(jnp.float32)

    args = (inp1, inp2, w1a, w1b, b1, w2f, b2, beta, gamma, lnb)

    return pl.pallas_call(
        _gate_kernel,
        out_shape=jax.ShapeDtypeStruct((B, D1), dt),
        in_specs=[_full_spec(a) for a in args],
        out_specs=pl.BlockSpec((B, D1), lambda *_: (0, 0)),
    )(*args)


def gate_reference(inp1, inp2, params):
    """Pure-JAX reference (mirrors the PyTorch forward in eval mode)."""
    cat = jnp.concatenate([inp1, inp2], axis=-1)
    w2 = jax.nn.sigmoid(cat @ params["fc1_w"] + params["fc1_b"])
    cat2 = jnp.concatenate([inp1, w2 * inp2], axis=-1)
    adjust = cat2 @ params["fc2_w"] + params["fc2_b"]
    alpha = jnp.minimum(jnp.linalg.norm(inp1) / jnp.linalg.norm(adjust)
                        * params["beta"][0], 1.0)
    out = inp1 + alpha * adjust
    mean = jnp.mean(out, axis=-1, keepdims=True)
    var = jnp.mean((out - mean) ** 2, axis=-1, keepdims=True)
    normed = (out - mean) * jax.lax.rsqrt(var + LN_EPS)
    return normed * params["ln_gamma"][None, :] + params["ln_beta"][None, :]


if __name__ == "__main__":
    B, D1, D2 = 8, 32, 32   # Gate(inp1_size=32, inp2_size=32)

    key = jax.random.PRNGKey(0)
    k = jax.random.split(key, 8)
    inp1 = jax.random.normal(k[0], (B, D1), jnp.float32)
    inp2 = jax.random.normal(k[1], (B, D2), jnp.float32)

    params = {
        "fc1_w": 0.1 * jax.random.normal(k[2], (D1 + D2, 1), jnp.float32),
        "fc1_b": 0.1 * jax.random.normal(k[3], (1,), jnp.float32),
        "fc2_w": 0.1 * jax.random.normal(k[4], (D1 + D2, D1), jnp.float32),
        "fc2_b": 0.1 * jax.random.normal(k[5], (D1,), jnp.float32),
        "beta": jax.random.normal(k[6], (1,), jnp.float32),
        "ln_gamma": jnp.ones((D1,), jnp.float32),
        "ln_beta": jnp.zeros((D1,), jnp.float32),
    }

    out = gate_forward(inp1, inp2, params)
    out = jax.block_until_ready(out)

    ref = gate_reference(inp1, inp2, params)
    assert out.shape == (B, D1)
    assert jnp.allclose(out, ref, atol=1e-4, rtol=1e-4), "mismatch vs JAX reference"

    print("KERNEL_OK")
</pallas_src>

<mosaic_0001>
module attributes {stable_mosaic.version = 11 : i64} {
  func.func @_gate_kernel(%arg0: memref<8x32xf32, #tpu.memory_space<vmem>>, %arg1: memref<8x32xf32, #tpu.memory_space<vmem>>, %arg2: memref<1x32xf32, #tpu.memory_space<vmem>>, %arg3: memref<1x32xf32, #tpu.memory_space<vmem>>, %arg4: memref<1x1xf32, #tpu.memory_space<vmem>>, %arg5: memref<64x64xf32, #tpu.memory_space<vmem>>, %arg6: memref<1x32xf32, #tpu.memory_space<vmem>>, %arg7: memref<1x1xf32, #tpu.memory_space<vmem>>, %arg8: memref<1x32xf32, #tpu.memory_space<vmem>>, %arg9: memref<1x32xf32, #tpu.memory_space<vmem>>, %arg10: memref<8x32xf32, #tpu.memory_space<vmem>>) attributes {dimension_semantics = [], scalar_prefetch = 0 : i64, scratch_operands = 0 : i64, tpu.core_type = #tpu.core_type<tc>} {
    %c0 = arith.constant 0 : index
    %c0_0 = arith.constant 0 : index
    %0 = vector.load %arg0[%c0, %c0_0] : memref<8x32xf32, #tpu.memory_space<vmem>>, vector<8x32xf32>
    %c0_1 = arith.constant 0 : index
    %c0_2 = arith.constant 0 : index
    %1 = vector.load %arg1[%c0_1, %c0_2] : memref<8x32xf32, #tpu.memory_space<vmem>>, vector<8x32xf32>
    %2 = tpu.concatenate %0, %1 in 1 : vector<8x32xf32>, vector<8x32xf32> -> vector<8x64xf32>
    %c0_3 = arith.constant 0 : index
    %c0_4 = arith.constant 0 : index
    %3 = vector.load %arg5[%c0_3, %c0_4] : memref<64x64xf32, #tpu.memory_space<vmem>>, vector<64x64xf32>
    %cst = arith.constant dense<0.000000e+00> : vector<8x64xf32>
    %4 = tpu.matmul %2, %3, %cst {dimension_numbers = #tpu.dot_dimension_numbers<[1], [0], [0], [1], [0, 0, 1, 1], [], []>} : vector<8x64xf32>, vector<64x64xf32>, vector<8x64xf32> -> vector<8x64xf32>
    %c0_5 = arith.constant 0 : index
    %c0_6 = arith.constant 0 : index
    %5 = vector.load %arg2[%c0_5, %c0_6] : memref<1x32xf32, #tpu.memory_space<vmem>>, vector<1x32xf32>
    %6 = vector.broadcast %5 : vector<1x32xf32> to vector<8x32xf32>
    %7 = arith.mulf %0, %6 : vector<8x32xf32>
    %cst_7 = arith.constant dense<0.000000e+00> : vector<8xf32>
    %8 = vector.multi_reduction <add>, %7, %cst_7 [1] : vector<8x32xf32> to vector<8xf32>
    %9 = vector.shape_cast %8 : vector<8xf32> to vector<8x1xf32>
    %c0_8 = arith.constant 0 : index
    %c0_9 = arith.constant 0 : index
    %10 = vector.load %arg3[%c0_8, %c0_9] : memref<1x32xf32, #tpu.memory_space<vmem>>, vector<1x32xf32>
    %11 = vector.broadcast %10 : vector<1x32xf32> to vector<8x32xf32>
    %12 = arith.mulf %1, %11 : vector<8x32xf32>
    %cst_10 = arith.constant dense<0.000000e+00> : vector<8xf32>
    %13 = vector.multi_reduction <add>, %12, %cst_10 [1] : vector<8x32xf32> to vector<8xf32>
    %14 = vector.shape_cast %13 : vector<8xf32> to vector<8x1xf32>
    %15 = arith.addf %9, %14 : vector<8x1xf32>
    %c0_11 = arith.constant 0 : index
    %c0_12 = arith.constant 0 : index
    %16 = vector.load %arg4[%c0_11, %c0_12] : memref<1x1xf32, #tpu.memory_space<vmem>>, vector<1x1xf32>
    %17 = vector.broadcast %16 : vector<1x1xf32> to vector<8x1xf32>
    %18 = arith.addf %15, %17 : vector<8x1xf32>
    %19 = arith.negf %18 : vector<8x1xf32>
    %20 = math.exp %19 : vector<8x1xf32>
    %cst_13 = arith.constant 1.000000e+00 : f32
    %21 = vector.broadcast %cst_13 : f32 to vector<8x1xf32>
    %22 = arith.addf %21, %20 : vector<8x1xf32>
    %23 = arith.divf %21, %22 : vector<8x1xf32>
    %24 = vector.extract_strided_slice %4 {offsets = [0, 0], sizes = [8, 32], strides = [1, 1]} : vector<8x64xf32> to vector<8x32xf32>
    %25 = vector.extract_strided_slice %4 {offsets = [0, 32], sizes = [8, 32], strides = [1, 1]} : vector<8x64xf32> to vector<8x32xf32>
    %26 = vector.broadcast %23 : vector<8x1xf32> to vector<8x32xf32>
    %27 = arith.mulf %26, %25 : vector<8x32xf32>
    %28 = arith.addf %24, %27 : vector<8x32xf32>
    %c0_14 = arith.constant 0 : index
    %c0_15 = arith.constant 0 : index
    %29 = vector.load %arg6[%c0_14, %c0_15] : memref<1x32xf32, #tpu.memory_space<vmem>>, vector<1x32xf32>
    %30 = vector.broadcast %29 : vector<1x32xf32> to vector<8x32xf32>
    %31 = arith.addf %28, %30 : vector<8x32xf32>
    %32 = arith.mulf %0, %0 : vector<8x32xf32>
    %33 = vector.shape_cast %32 : vector<8x32xf32> to vector<1x8x32xf32>
    %cst_16 = arith.constant dense<0.000000e+00> : vector<1xf32>
    %34 = vector.multi_reduction <add>, %33, %cst_16 [1, 2] : vector<1x8x32xf32> to vector<1xf32>
    %35 = vector.shape_cast %34 : vector<1xf32> to vector<1x1x1xf32>
    %36 = vector.extract %35[0, 0, 0] : f32 from vector<1x1x1xf32>
    %37 = arith.mulf %31, %31 : vector<8x32xf32>
    %38 = vector.shape_cast %37 : vector<8x32xf32> to vector<1x8x32xf32>
    %cst_17 = arith.constant dense<0.000000e+00> : vector<1xf32>
    %39 = vector.multi_reduction <add>, %38, %cst_17 [1, 2] : vector<1x8x32xf32> to vector<1xf32>
    %40 = vector.shape_cast %39 : vector<1xf32> to vector<1x1x1xf32>
    %41 = vector.extract %40[0, 0, 0] : f32 from vector<1x1x1xf32>
    %42 = math.sqrt %36 : f32
    %43 = math.rsqrt %41 : f32
    %44 = arith.mulf %42, %43 : f32
    %c0_18 = arith.constant 0 : index
    %c0_19 = arith.constant 0 : index
    %45 = vector.load %arg7[%c0_18, %c0_19] : memref<1x1xf32, #tpu.memory_space<vmem>>, vector<1x1xf32>
    %46 = vector.broadcast %44 : f32 to vector<1x1xf32>
    %47 = arith.mulf %46, %45 : vector<1x1xf32>
    %cst_20 = arith.constant 1.000000e+00 : f32
    %48 = vector.broadcast %cst_20 : f32 to vector<1x1xf32>
    %49 = arith.minimumf %47, %48 : vector<1x1xf32>
    %50 = vector.broadcast %49 : vector<1x1xf32> to vector<8x32xf32>
    %51 = arith.mulf %50, %31 : vector<8x32xf32>
    %52 = arith.addf %0, %51 : vector<8x32xf32>
    %cst_21 = arith.constant dense<0.000000e+00> : vector<8xf32>
    %53 = vector.multi_reduction <add>, %52, %cst_21 [1] : vector<8x32xf32> to vector<8xf32>
    %54 = vector.shape_cast %53 : vector<8xf32> to vector<8x1xf32>
    %cst_22 = arith.constant 3.200000e+01 : f32
    %55 = vector.broadcast %cst_22 : f32 to vector<8x1xf32>
    %56 = arith.divf %54, %55 : vector<8x1xf32>
    %57 = vector.broadcast %56 : vector<8x1xf32> to vector<8x32xf32>
    %58 = arith.subf %52, %57 : vector<8x32xf32>
    %59 = arith.mulf %58, %58 : vector<8x32xf32>
    %cst_23 = arith.constant dense<0.000000e+00> : vector<8xf32>
    %60 = vector.multi_reduction <add>, %59, %cst_23 [1] : vector<8x32xf32> to vector<8xf32>
    %61 = vector.shape_cast %60 : vector<8xf32> to vector<8x1xf32>
    %cst_24 = arith.constant 3.200000e+01 : f32
    %62 = vector.broadcast %cst_24 : f32 to vector<8x1xf32>
    %63 = arith.divf %61, %62 : vector<8x1xf32>
    %64 = vector.broadcast %56 : vector<8x1xf32> to vector<8x32xf32>
    %65 = arith.subf %52, %64 : vector<8x32xf32>
    %cst_25 = arith.constant 9.99999974E-6 : f32
    %66 = vector.broadcast %cst_25 : f32 to vector<8x1xf32>
    %67 = arith.addf %63, %66 : vector<8x1xf32>
    %68 = math.rsqrt %67 : vector<8x1xf32>
    %69 = vector.broadcast %68 : vector<8x1xf32> to vector<8x32xf32>
    %70 = arith.mulf %65, %69 : vector<8x32xf32>
    %c0_26 = arith.constant 0 : index
    %c0_27 = arith.constant 0 : index
    %71 = vector.load %arg8[%c0_26, %c0_27] : memref<1x32xf32, #tpu.memory_space<vmem>>, vector<1x32xf32>
    %72 = vector.broadcast %71 : vector<1x32xf32> to vector<8x32xf32>
    %73 = arith.mulf %70, %72 : vector<8x32xf32>
    %c0_28 = arith.constant 0 : index
    %c0_29 = arith.constant 0 : index
    %74 = vector.load %arg9[%c0_28, %c0_29] : memref<1x32xf32, #tpu.memory_space<vmem>>, vector<1x32xf32>
    %75 = vector.broadcast %74 : vector<1x32xf32> to vector<8x32xf32>
    %76 = arith.addf %73, %75 : vector<8x32xf32>
    %c0_30 = arith.constant 0 : index
    %c0_31 = arith.constant 0 : index
    %77 = vector.load %arg10[%c0_30, %c0_31] : memref<8x32xf32, #tpu.memory_space<vmem>>, vector<8x32xf32>
    tpu.vector_store %arg10[%c0_30, %c0_31], %76 {strides = array<i32>} : memref<8x32xf32, #tpu.memory_space<vmem>>, vector<8x32xf32>,
    return
  }
}

</mosaic_0001>

<llo_original>
// kernel: tpu_custom_call.1
$region0: #{tpu_custom_call.1}
  #allocation0 [shape = 'u32[]', space=smem, size = 0x4, offset = 0x4, fixed_abs, tag = 'smem constant byte address 0x4 - core index']
  #allocation1 [shape = 'u32[144,128]{1,0:T(1,128)}', space=vmem, size = 0x12000, scoped, tag = 'internal scratch']
  #allocation2 [shape = 'f32[1,1]{1,0:T(1,128)S(1)}', space=vmem, size = 0x200, scoped, tag = 'scoped memory for tpu_custom_call.1']
  #allocation3 [shape = 'f32[1,1]{1,0:T(1,128)S(1)}', space=vmem, size = 0x200, scoped, tag = 'scoped memory for tpu_custom_call.1']
  %s0 = inlined_call_operand.hbm [shape: f32[8,32], index: 0, kind: input, shape index: {}]
  %s1 = inlined_call_operand.vmem [shape: f32[8,32], index: 1, kind: input, shape index: {}]
  %s2 = inlined_call_operand.vmem [shape: f32[1,32], index: 2, kind: input, shape index: {}]
  %s3 = inlined_call_operand.vmem [shape: f32[1,32], index: 3, kind: input, shape index: {}]
  %s4 = inlined_call_operand.<no memory space> [shape: f32[1,1], index: 4, kind: input, shape index: {}]
  %s5 = inlined_call_operand.hbm [shape: f32[64,64], index: 5, kind: input, shape index: {}]
  %s6 = inlined_call_operand.vmem [shape: f32[1,32], index: 6, kind: input, shape index: {}]
  %s7 = inlined_call_operand.<no memory space> [shape: f32[1,1], index: 7, kind: input, shape index: {}]
  %s8 = inlined_call_operand.vmem [shape: f32[1,32], index: 8, kind: input, shape index: {}]
  %s9 = inlined_call_operand.vmem [shape: f32[1,32], index: 9, kind: input, shape index: {}]
  %s10 = inlined_call_operand.hbm [shape: f32[8,32], index: 10, kind: output, shape index: {}]
  %s11 = sld [smem:[#allocation0]]
  $region58: #{tpu_custom_call.1} parent=0
    _
  %s13 = ssub.s32 1, %s11
  %s14 = scalar_select 0, %s13, %s11
  %v15 = vstv %s4
  %16 = vst [vmem:[#allocation2] sm:$0x1] %v15
  %v17 = vstv %s7
  %18 = vst [vmem:[#allocation3] sm:$0x1] %v17
  $region1: #{tpu_custom_call.1} parent=0
    #allocation4 [shape = 'u8[4096]{0}', space=vmem, size = 0x1000, scoped, tag = 'input window, operand 0, single buffered']
    #allocation5 [shape = 's32[1]{0}', space=sflag, size = 0x4, scoped, tag = 'scoped memory for tpu_custom_call.1']
    #allocation6 [shape = 's32[1]{0}', space=sflag, size = 0x4, scoped, tag = 'scoped memory for tpu_custom_call.1']
    #allocation7 [shape = 'u8[32768]{0}', space=vmem, size = 0x8000, scoped, tag = 'input window, operand 5, single buffered']
    #allocation8 [shape = 's32[1]{0}', space=sflag, size = 0x4, scoped, tag = 'scoped memory for tpu_custom_call.1']
    #allocation9 [shape = 'u8[4096]{0}', space=vmem, size = 0x1000, scoped, tag = 'output window, operand 0, single buffered']
    %19 = vsyncpa [#allocation5], 0
    %20 = vsyncpa [#allocation8], 0
    %21 = vsyncpa [#allocation6], 0
    // Predicated region
    $region2: #{tpu_custom_call.1} parent=1 // pred_check
      _
    $region3: #{tpu_custom_call.1} parent=1 // pred_check_branch
      %23 = sbr.rel (0) target = $region5
    $region4: #{tpu_custom_call.1} parent=1 // pred_region
      %s25 = ssub.s32 128, 128
      %26 = vsyncadd [#allocation5], %s25
      %s28 = sshll.u32 [#allocation4], 4
      %s29 = int_to_ptr.vmem [resolvable:$true] %s28
      %31 = dma.hbm_to_vmem [thread:$0]  %s0, 128, %s29, [#allocation5]
    $region5: #{tpu_custom_call.1} parent=1 // pred_fallthru
      _
    // Predicated region
    $region6: #{tpu_custom_call.1} parent=1 // pred_check
      _
    $region7: #{tpu_custom_call.1} parent=1 // pred_check_branch
      %33 = sbr.rel (0) target = $region9
    $region8: #{tpu_custom_call.1} parent=1 // pred_region
      _
    $region9: #{tpu_custom_call.1} parent=1 // pred_fallthru
      _
    // Predicated region
    $region10: #{tpu_custom_call.1} parent=1 // pred_check
      _
    $region11: #{tpu_custom_call.1} parent=1 // pred_check_branch
      %35 = sbr.rel (0) target = $region13
    $region12: #{tpu_custom_call.1} parent=1 // pred_region
      _
    $region13: #{tpu_custom_call.1} parent=1 // pred_fallthru
      _
    // Predicated region
    $region14: #{tpu_custom_call.1} parent=1 // pred_check
      _
    $region15: #{tpu_custom_call.1} parent=1 // pred_check_branch
      %37 = sbr.rel (0) target = $region17
    $region16: #{tpu_custom_call.1} parent=1 // pred_region
      _
    $region17: #{tpu_custom_call.1} parent=1 // pred_fallthru
      _
    // Predicated region
    $region18: #{tpu_custom_call.1} parent=1 // pred_check
      _
    $region19: #{tpu_custom_call.1} parent=1 // pred_check_branch
      %39 = sbr.rel (0) target = $region21
    $region20: #{tpu_custom_call.1} parent=1 // pred_region
      _
    $region21: #{tpu_custom_call.1} parent=1 // pred_fallthru
      _
    // Predicated region
    $region22: #{tpu_custom_call.1} parent=1 // pred_check
      _
    $region23: #{tpu_custom_call.1} parent=1 // pred_check_branch
      %41 = sbr.rel (0) target = $region25
    $region24: #{tpu_custom_call.1} parent=1 // pred_region
      %s43 = ssub.s32 1024, 1024
      %44 = vsyncadd [#allocation8], %s43
      %s45 = sshll.u32 [#allocation7], 4
      %s46 = int_to_ptr.vmem [resolvable:$true] %s45
      %51 = dma.hbm_to_vmem [thread:$0]  %s5, 1024, %s46, [#allocation8], 128, 128, 8
    $region25: #{tpu_custom_call.1} parent=1 // pred_fallthru
      _
    // Predicated region
    $region26: #{tpu_custom_call.1} parent=1 // pred_check
      _
    $region27: #{tpu_custom_call.1} parent=1 // pred_check_branch
      %53 = sbr.rel (0) target = $region29
    $region28: #{tpu_custom_call.1} parent=1 // pred_region
      _
    $region29: #{tpu_custom_call.1} parent=1 // pred_fallthru
      _
    // Predicated region
    $region30: #{tpu_custom_call.1} parent=1 // pred_check
      _
    $region31: #{tpu_custom_call.1} parent=1 // pred_check_branch
      %55 = sbr.rel (0) target = $region33
    $region32: #{tpu_custom_call.1} parent=1 // pred_region
      _
    $region33: #{tpu_custom_call.1} parent=1 // pred_fallthru
      _
    // Predicated region
    $region34: #{tpu_custom_call.1} parent=1 // pred_check
      _
    $region35: #{tpu_custom_call.1} parent=1 // pred_check_branch
      %57 = sbr.rel (0) target = $region37
    $region36: #{tpu_custom_call.1} parent=1 // pred_region
      _
    $region37: #{tpu_custom_call.1} parent=1 // pred_fallthru
      _
    // Predicated region
    $region38: #{tpu_custom_call.1} parent=1 // pred_check
      _
    $region39: #{tpu_custom_call.1} parent=1 // pred_check_branch
      %59 = sbr.rel (0) target = $region41
    $region40: #{tpu_custom_call.1} parent=1 // pred_region
      _
    $region41: #{tpu_custom_call.1} parent=1 // pred_fallthru
      _
    // Predicated region
    $region42: #{tpu_custom_call.1} parent=1 // pred_check
      _
    $region43: #{tpu_custom_call.1} parent=1 // pred_check_branch
      %61 = sbr.rel (0) target = $region45
    $region44: #{tpu_custom_call.1} parent=1 // pred_region
      %62 = dma.done [#allocation5], 128
    $region45: #{tpu_custom_call.1} parent=1 // pred_fallthru
      _
    // Predicated region
    $region46: #{tpu_custom_call.1} parent=1 // pred_check
      _
    $region47: #{tpu_custom_call.1} parent=1 // pred_check_branch
      %64 = sbr.rel (0) target = $region49
    $region48: #{tpu_custom_call.1} parent=1 // pred_region
      %65 = dma.done [#allocation8], 1024
    $region49: #{tpu_custom_call.1} parent=1 // pred_fallthru
      _
    %v66 = vld [vmem:[#allocation4] sm:$0xff]
    %v67 = vld [vmem:[%s1] sm:$0xff]
    %69 = vrot.lane.b32.xlu0 %v67, 32
    %v70 = vpop.permute.xlu0 %69
    %vm72 = vcmask 261120
    %v73 = vsel %vm72, %v66, %v70
    %v74 = vld [vmem:[#allocation7] sm:$0xff]
    %v75 = vld [vmem:[#allocation7 + $0x8] sm:$0xff]
    %v76 = vld [vmem:[#allocation7 + $0x10] sm:$0xff]
    %v77 = vld [vmem:[#allocation7 + $0x18] sm:$0xff]
    %v78 = vld [vmem:[#allocation7 + $0x20] sm:$0xff]
    %v79 = vld [vmem:[#allocation7 + $0x28] sm:$0xff]
    %v80 = vld [vmem:[#allocation7 + $0x30] sm:$0xff]
    %v81 = vld [vmem:[#allocation7 + $0x38] sm:$0xff]
    %vm82 = vcmask 523264
    %v84 = vsel %vm82, %v73, 0
    %86 = vmatprep.subr.mxu0 0.0
    %87 = vmatpush1.msra.mxu0 %v74
    %88 = vmatprep.subr.mxu0 0.0
    %89 = vmatpush1.msra.mxu0 %v75
    %90 = vmatprep.subr.mxu0 0.0
    %91 = vmatpush1.msra.mxu0 %v76
    %92 = vmatprep.subr.mxu0 0.0
    %93 = vmatpush1.msra.mxu0 %v77
    %94 = vmatprep.subr.mxu0 0.0
    %95 = vmatpush1.msra.mxu0 %v78
    %96 = vmatprep.subr.mxu0 0.0
    %97 = vmatpush1.msra.mxu0 %v79
    %98 = vmatprep.subr.mxu0 0.0
    %99 = vmatpush1.msra.mxu0 %v80
    %100 = vmatprep.subr.mxu0 0.0
    %101 = vmatpush1.msra.mxu0 %v81
    %102 = vmatprep.subr.mxu0 0.0
    %103 = vmatpush1.msra.mxu0 0.0
    %104 = vmatprep.subr.mxu0 0.0
    %105 = vmatpush1.msra.mxu0 0.0
    %106 = vmatprep.subr.mxu0 0.0
    %107 = vmatpush1.msra.mxu0 0.0
    %108 = vmatprep.subr.mxu0 0.0
    %109 = vmatpush1.msra.mxu0 0.0
    %110 = vmatprep.subr.mxu0 0.0
    %111 = vmatpush1.msra.mxu0 0.0
    %112 = vmatprep.subr.mxu0 0.0
    %113 = vmatpush1.msra.mxu0 0.0
    %114 = vmatprep.subr.mxu0 0.0
    %115 = vmatpush1.msra.mxu0 0.0
    %116 = vmatprep.subr.mxu0 0.0
    %117 = vmatpush1.msra.mxu0 0.0
    %118 = vmatprep.subr.mxu0 0.0
    %119 = vmatpush1.msra.mxu0 0.0
    %120 = vmatprep.subr.mxu0 0.0
    %121 = vmatpush1.msra.mxu0 0.0
    %122 = vmatprep.subr.mxu0 0.0
    %123 = vmatpush1.msra.mxu0 0.0
    %124 = vmatprep.subr.mxu0 0.0
    %125 = vmatpush1.msra.mxu0 0.0
    %126 = vmatprep.subr.mxu0 0.0
    %127 = vmatpush1.msra.mxu0 0.0
    %128 = vmatprep.subr.mxu0 0.0
    %129 = vmatpush1.msra.mxu0 0.0
    %130 = vmatprep.subr.mxu0 0.0
    %131 = vmatpush1.msra.mxu0 0.0
    %132 = vmatprep.subr.mxu0 0.0
    %133 = vmatpush1.msra.mxu0 0.0
    %134 = vmatprep.subr.mxu0 0.0
    %135 = vmatpush1.msra.mxu0 0.0
    %136 = vmatprep.subr.mxu0 0.0
    %137 = vmatpush1.msra.mxu0 0.0
    %138 = vmatprep.subr.mxu0 0.0
    %139 = vmatpush1.msra.mxu0 0.0
    %140 = vmatprep.subr.mxu0 0.0
    %141 = vmatpush1.msra.mxu0 0.0
    %142 = vmatprep.subr.mxu0 0.0
    %143 = vmatpush1.msra.mxu0 0.0
    %144 = vmatprep.subr.mxu0 0.0
    %145 = vmatpush1.msra.mxu0 0.0
    %146 = vmatprep.subr.mxu0 0.0
    %147 = vmatpush1.msra.mxu0 0.0
    %148 = vmatprep.subr.mxu0 0.0
    %149 = vmatpush1.msra.mxu0 0.0
    %150 = vmatprep.mubr.f32.mxu0 0.0
    %151 = vmatmul.mubr.f32.gmra.mrb[0].mxu0 %v84
    %v152 = vpop.f32.mrb[0].mxu0
    %v153 = vadd.f32 0.0, %v152
    %v154 = vpop.f32.mrb[0].mxu0
    %155 = vdwg.mxu0
    %v156 = vld [vmem:[%s2] sm:$0x1]
    %v158 = vlaneseq
    %v159 = vshrl.u32 %v158, 7
    %v160 = vsub.s32 0, %v159
    %v161 = vrot.slane %v156, %v160
    %v163 = vmul.f32 %v66, %v161
    %v164 = vsel %vm72, %v163, 0.0
    %165 = vadd.xlane.f32.xlu0 %v164
    %v166 = vpop.xlane.xlu0 %165
    %v167 = vld [vmem:[%s3] sm:$0x1]
    %v169 = vlaneseq
    %v170 = vshrl.u32 %v169, 7
    %v171 = vsub.s32 0, %v170
    %v172 = vrot.slane %v167, %v171
    %v174 = vmul.f32 %v67, %v172
    %v175 = vsel %vm72, %v174, 0.0
    %176 = vadd.xlane.f32.xlu0 %v175
    %v177 = vpop.xlane.xlu0 %176
    %v178 = vadd.f32 %v166, %v177
    %v179 = vld [vmem:[#allocation2] sm:$0x1]
    %v181 = vlaneseq
    %v182 = vshrl.u32 %v181, 7
    %v183 = vsub.s32 0, %v182
    %v184 = vrot.slane %v179, %v183
    %v186 = vadd.f32 %v178, %v184
    %v187 = vxor.u32 %v186, 2147483648
    %v188 = vmul.f32 %v187, 1.442695
    %v189 = vpow.pop %v188
    %v190 = vadd.f32 %v189, 1.0
    %v191 = vrcp.pop %v190
    %v192 = vmul.f32 1.0, %v191
    %194 = vset.pattern.permute.xlu0 0
    %195 = vperm.xlu0 %194, %v192
    %v196 = vpop.permute.xlu0 %195
    %v198 = vmul.f32 %v196, %v153
    %200 = vrot.lane.b32.xlu0 %v198, 96
    %v201 = vpop.permute.xlu0 %200
    %v203 = vadd.f32 %v153, %v201
    %v204 = vld [vmem:[%s6] sm:$0x1]
    %v206 = vlaneseq
    %v207 = vshrl.u32 %v206, 7
    %v208 = vsub.s32 0, %v207
    %v209 = vrot.slane %v204, %v208
    %v211 = vadd.f32 %v203, %v209
    %v212 = vmul.f32 %v66, %v66
    %v213 = vsel %vm72, %v212, 0.0
    %214 = vadd.xlane.f32.xlu0 %v213
    %v215 = vpop.xlane.xlu0 %214
    %v216 = vrot.slane %v215, 4
    %v217 = vadd.f32 %v215, %v216
    %v218 = vrot.slane %v217, 2
    %v219 = vadd.f32 %v217, %v218
    %v220 = vrot.slane %v219, 1
    %v221 = vadd.f32 %v219, %v220
    %s222 = vtos %v221
    %v223 = vmul.f32 %v211, %v211
    %v224 = vsel %vm72, %v223, 0.0
    %225 = vadd.xlane.f32.xlu0 %v224
    %v226 = vpop.xlane.xlu0 %225
    %v227 = vrot.slane %v226, 4
    %v228 = vadd.f32 %v226, %v227
    %v229 = vrot.slane %v228, 2
    %v230 = vadd.f32 %v228, %v229
    %v231 = vrot.slane %v230, 1
    %v232 = vadd.f32 %v230, %v231
    %s233 = vtos %v232
    %v234 = vstv %s222
    %v235 = vrsqrt.pop %v234
    %v236 = vmul.f32 %v234, %v235
    %vm237 = vcmp.eq.f32.partialorder %v234, inf
    %v238 = vsel %vm237, %v234, %v236
    %vm239 = vcmp.eq.f32.partialorder %v234, 0.0
    %v240 = vand.u32 %v234, 2147483648
    %v241 = vsel %vm239, %v240, %v238
    %s242 = vtos %v241
    %v243 = vstv %s233
    %v244 = vrsqrt.pop %v243
    %s245 = vtos %v244
    %s246 = smul.f32 %s242, %s245
    %v247 = vld [vmem:[#allocation3] sm:$0x1]
    %v248 = vstv %s246
    %v249 = vmul.f32 %v248, %v247
    %v250 = vmin.f32 %v249, 1.0
    %v252 = vlaneseq
    %v253 = vshrl.u32 %v252, 7
    %v254 = vsub.s32 0, %v253
    %v255 = vrot.slane %v250, %v254
    %256 = vset.pattern.permute.xlu0 0
    %257 = vperm.xlu0 %256, %v255
    %v258 = vpop.permute.xlu0 %257
    %v260 = vmul.f32 %v258, %v211
    %v261 = vadd.f32 %v66, %v260
    %v262 = vsel %vm72, %v261, 0.0
    %263 = vadd.xlane.f32.xlu0 %v262
    %v264 = vpop.xlane.xlu0 %263
    %v265 = vrcp.pop 32.0
    %v266 = vmul.f32 %v264, %v265
    %v267 = vsub.f32 %v261, %v266
    %v268 = vmul.f32 %v267, %v267
    %v269 = vsel %vm72, %v268, 0.0
    %270 = vadd.xlane.f32.xlu0 %v269
    %v271 = vpop.xlane.xlu0 %270
    %v272 = vmul.f32 %v271, %v265
    %v273 = vadd.f32 %v272, 1e-05
    %v274 = vrsqrt.pop %v273
    %v275 = vmul.f32 %v267, %v274
    %v276 = vld [vmem:[%s8] sm:$0x1]
    %v278 = vlaneseq
    %v279 = vshrl.u32 %v278, 7
    %v280 = vsub.s32 0, %v279
    %v281 = vrot.slane %v276, %v280
    %v283 = vmul.f32 %v275, %v281
    %v284 = vld [vmem:[%s9] sm:$0x1]
    %v286 = vlaneseq
    %v287 = vshrl.u32 %v286, 7
    %v288 = vsub.s32 0, %v287
    %v289 = vrot.slane %v284, %v288
    %v291 = vadd.f32 %v283, %v289
    %292 = vst.msk [vmem:[#allocation9] sm:$0xff] %vm72, %v291
    // Predicated region
    $region50: #{tpu_custom_call.1} parent=1 // pred_check
      _
    $region51: #{tpu_custom_call.1} parent=1 // pred_check_branch
      %294 = sbr.rel (0) target = $region53
    $region52: #{tpu_custom_call.1} parent=1 // pred_region
      %s296 = ssub.s32 128, 128
      %297 = vsyncadd [#allocation6], %s296
      %s299 = sshll.u32 [#allocation9], 4
      %s300 = int_to_ptr.vmem [resolvable:$true] %s299
      %302 = dma.vmem_to_hbm [thread:$0]  %s300, 128, %s10, [#allocation6]
    $region53: #{tpu_custom_call.1} parent=1 // pred_fallthru
      _
    // Predicated region
    $region54: #{tpu_custom_call.1} parent=1 // pred_check
      _
    $region55: #{tpu_custom_call.1} parent=1 // pred_check_branch
      %304 = sbr.rel (0) target = $region57
    $region56: #{tpu_custom_call.1} parent=1 // pred_region
      %305 = dma.done [#allocation6], 128
    $region57: #{tpu_custom_call.1} parent=1 // pred_fallthru
      _
    %306 = vsyncpa [#allocation5], 1
    %307 = vsyncpa [#allocation8], 1
    %308 = vsyncpa [#allocation6], 1

</llo_original>
